<compile_context>
chip_gen: v7x
topology: tpu7x:2x2x1
jax: 0.10.0
libtpu: 0.0.40
codegen_flags: <defaults>
</compile_context>

<pallas_src>
import functools

import numpy as np

import jax
import jax.numpy as jnp
from jax.experimental import pallas as pl
from jax.experimental.pallas import tpu as pltpu


def _fire_kernel(x_ref, mask_ref, wsq_ref, bsq_ref, wex_ref, bex_ref,
                 o_ref, im2col_ref, *, W, Csq):
    N = x_ref.shape[-1]                                   # bt * H * W (static)

    # ---- squeeze 1x1 conv + bias + ReLU: one wide-N bf16 matmul ------------
    s = jnp.dot(wsq_ref[...], x_ref[...], preferred_element_type=jnp.float32)
    s = jnp.maximum(s + bsq_ref[...], 0.0)                # (Csq, N) f32

    # ---- im2col for the 3x3 conv -------------------------------------------
    # Tap (dy,dx) is a static lane roll (XLU) of s, border-masked (masks are
    # precomputed constants passed as a grid-invariant input), streamed into
    # VMEM scratch at static sublane offsets (no jnp.concatenate copy).
    for t in range(9):
        dy, dx = divmod(t, 3)
        off = (dy - 1) * W + (dx - 1)
        tap = s if off == 0 else pltpu.roll(s, shift=(-off) % N, axis=1)
        if t != 4:                                        # centre tap mask == 1
            tap = tap * mask_ref[t:t + 1, :]
        im2col_ref[t * Csq:(t + 1) * Csq, :] = tap.astype(im2col_ref.dtype)

    # ---- fused expand1x1 + expand3x3: ONE deep-K matmul, one store ----------
    lhs = im2col_ref[...]
    if lhs.dtype != jnp.bfloat16:
        lhs = lhs.astype(jnp.bfloat16)
    e = jnp.dot(wex_ref[...], lhs, preferred_element_type=jnp.float32)
    o_ref[...] = jnp.maximum(e + bex_ref[...], 0.0)       # (Ce1+Ce3, N) lane-dense


def _border_masks(H, W):
    """(9, H*W) {0,1} validity masks for the 3x3 taps (zero-padding borders)."""
    P = H * W
    py, px = np.divmod(np.arange(P), W)
    rows = []
    for dy in range(3):
        for dx in range(3):
            m = np.ones(P, dtype=bool)
            if dy == 0:
                m &= py >= 1
            elif dy == 2:
                m &= py <= H - 2
            if dx == 0:
                m &= px >= 1
            elif dx == 2:
                m &= px <= W - 2
            rows.append(m)
    return np.stack(rows).astype(np.float32)


def _has_two_tensorcores():
    # v7x (and megacore v4/v5p) have 2 TensorCores the "parallel" grid axis can
    # shard across; v5e/v6e are single-TC, where fewer/fatter steps win.
    try:
        kind = jax.devices()[0].device_kind.lower()
    except Exception:
        return False
    return any(tag in kind for tag in ("v7", "v4", "v5p"))


def _pick_images_per_block(B, Cin, Cout, Csq, P, *, two_tc, vmem_budget):
    """Images per grid step, derived from a VMEM budget (not a fixed cap)."""
    def vmem_bytes(bt):
        n = bt * P
        return (2 * Cin * n * 2            # input block, bf16, double-buffered
                + 2 * Cout * n * 4         # output block, f32, double-buffered
                + 9 * Csq * n * 4          # im2col scratch (worst case f32)
                + 2 * 9 * n * 4            # mask block, double-buffered
                + 2 * (Csq * Cin + Cout * 9 * Csq) * 2
                + 2 * (Csq + Cout) * 4)

    cands = [bt for bt in range(1, B + 1)
             if B % bt == 0 and (bt == B or (bt * P) % 128 == 0)]
    fitting = [bt for bt in cands if vmem_bytes(bt) <= vmem_budget] or cands
    if two_tc:
        even = [bt for bt in fitting if (B // bt) % 2 == 0]
        if even:
            return max(even)               # even grid keeps both TCs fed
    return max(fitting)                    # 1-TC: fewest, fattest steps


def fire_forward_nchw(x_nchw, params):
    """x_nchw: (B, Cin, H, W) float32. Returns (B, Ce1+Ce3, H, W) float32."""
    w_sq, b_sq, w_e1, b_e1, w_e3, b_e3 = params   # PyTorch conv layouts
    B, Cin, H, W = x_nchw.shape
    Csq = w_sq.shape[0]
    Ce1 = w_e1.shape[0]
    Ce3 = w_e3.shape[0]
    Cout = Ce1 + Ce3
    P = H * W

    # Batch folded into the lane axis: NCHW -> (Cin, B*H*W). Activations in
    # bf16 (halves activation DMA); matmul accumulation stays f32.
    x2d = jnp.transpose(x_nchw, (1, 0, 2, 3)).reshape(Cin, B * P)
    x2d = x2d.astype(jnp.bfloat16)

    # One-off tiny weight packing (outside the kernel):
    wsq = w_sq.reshape(Csq, Cin).astype(jnp.bfloat16)
    # expand weights fused: rows [0, Ce1) hold we1 in the centre-tap K block,
    # rows [Ce1, Cout) hold we3 with (dy, dx, channel) K ordering matching the
    # im2col scratch layout.
    we3 = jnp.transpose(w_e3, (0, 2, 3, 1)).reshape(Ce3, 9 * Csq)
    wex = jnp.zeros((Cout, 9 * Csq), jnp.float32)
    wex = wex.at[:Ce1, 4 * Csq:5 * Csq].set(w_e1.reshape(Ce1, Csq))
    wex = wex.at[Ce1:, :].set(we3)
    wex = wex.astype(jnp.bfloat16)
    bsq = b_sq.reshape(Csq, 1).astype(jnp.float32)
    bex = jnp.concatenate([b_e1, b_e3]).reshape(Cout, 1).astype(jnp.float32)

    two_tc = _has_two_tensorcores()
    bt = _pick_images_per_block(B, Cin, Cout, Csq, P, two_tc=two_tc,
                                vmem_budget=24 * 1024 * 1024)
    nblk = bt * P
    grid = (B // bt,)

    # Precomputed (trace-time, numpy) border masks, tiled over the bt images in
    # a block -- grid-invariant kernel input.
    mask = jnp.asarray(np.tile(_border_masks(H, W), (1, bt)), dtype=jnp.float32)

    # bf16 scratch when Csq is 16-aligned (true for real Fire configs) so the
    # per-tap sublane-offset stores are packed-tile aligned; f32 otherwise.
    scr_dtype = jnp.bfloat16 if Csq % 16 == 0 else jnp.float32

    kernel = functools.partial(_fire_kernel, W=W, Csq=Csq)

    out2d = pl.pallas_call(
        kernel,
        out_shape=jax.ShapeDtypeStruct((Cout, B * P), jnp.float32),
        grid_spec=pltpu.PrefetchScalarGridSpec(
            num_scalar_prefetch=0,
            grid=grid,
            in_specs=[
                pl.BlockSpec((Cin, nblk), lambda i: (0, i)),
                pl.BlockSpec((9, nblk), lambda i: (0, 0)),
                pl.BlockSpec((Csq, Cin), lambda i: (0, 0)),
                pl.BlockSpec((Csq, 1), lambda i: (0, 0)),
                pl.BlockSpec((Cout, 9 * Csq), lambda i: (0, 0)),
                pl.BlockSpec((Cout, 1), lambda i: (0, 0)),
            ],
            out_specs=pl.BlockSpec((Cout, nblk), lambda i: (0, i)),
            scratch_shapes=[pltpu.VMEM((9 * Csq, nblk), scr_dtype)],
        ),
        compiler_params=pltpu.CompilerParams(
            dimension_semantics=("parallel",),
            vmem_limit_bytes=32 * 1024 * 1024,   # safe on v7x (64 MiB phys) too
        ),
    )(x2d, mask, wsq, bsq, wex, bex)

    # Free-ish reshape/transpose back to NCHW (channel concat already fused).
    return jnp.transpose(out2d.reshape(Cout, B, H, W), (1, 0, 2, 3))


def _reference_fire_nchw(x_nchw, params):
    """Pure-JAX reference (NCHW / OIHW, like PyTorch)."""
    w_sq, b_sq, w_e1, b_e1, w_e3, b_e3 = params

    def conv(x, w, pad):
        return jax.lax.conv_general_dilated(
            x, w, window_strides=(1, 1), padding=pad,
            dimension_numbers=("NCHW", "OIHW", "NCHW"),
            precision=jax.lax.Precision.HIGHEST)

    s = jax.nn.relu(conv(x_nchw, w_sq, "VALID") + b_sq.reshape(1, -1, 1, 1))
    e1 = jax.nn.relu(conv(s, w_e1, "VALID") + b_e1.reshape(1, -1, 1, 1))
    e3 = jax.nn.relu(conv(s, w_e3, [(1, 1), (1, 1)]) + b_e3.reshape(1, -1, 1, 1))
    return jnp.concatenate([e1, e3], axis=1)


def init_fire_params(key, inplanes, squeeze_planes, expand1x1_planes,
                     expand3x3_planes):
    """Deterministic synthetic parameters in PyTorch Conv2d (OIHW / (O,)) layout."""
    ks = jax.random.split(key, 6)
    scale = 0.1
    w_sq = scale * jax.random.normal(ks[0], (squeeze_planes, inplanes, 1, 1), jnp.float32)
    b_sq = scale * jax.random.normal(ks[1], (squeeze_planes,), jnp.float32)
    w_e1 = scale * jax.random.normal(ks[2], (expand1x1_planes, squeeze_planes, 1, 1), jnp.float32)
    b_e1 = scale * jax.random.normal(ks[3], (expand1x1_planes,), jnp.float32)
    w_e3 = scale * jax.random.normal(ks[4], (expand3x3_planes, squeeze_planes, 3, 3), jnp.float32)
    b_e3 = scale * jax.random.normal(ks[5], (expand3x3_planes,), jnp.float32)
    return (w_sq, b_sq, w_e1, b_e1, w_e3, b_e3)


if __name__ == "__main__":
    key = jax.random.PRNGKey(0)
    k_x, k_p = jax.random.split(key)

    B, Cin, H, W = 2, 4, 16, 16
    squeeze_planes, expand1x1_planes, expand3x3_planes = 16, 16, 16

    x = jax.random.normal(k_x, (B, Cin, H, W), jnp.float32)
    params = init_fire_params(k_p, Cin, squeeze_planes,
                              expand1x1_planes, expand3x3_planes)

    out = jax.jit(fire_forward_nchw)(x, params)
    out = jax.block_until_ready(out)

    ref = _reference_fire_nchw(x, params)
    assert out.shape == (B, expand1x1_planes + expand3x3_planes, H, W)
    # bf16-MXU path: tolerance loosened from 1e-4 per the review's note
    # (values are O(0.1), observed error is O(1e-3)).
    err = jnp.max(jnp.abs(out - ref))
    assert jnp.allclose(out, ref, atol=2e-2, rtol=2e-2), \
        f"mismatch: max abs err {err}"

    print("KERNEL_OK")
</pallas_src>

<mosaic_0001>
module attributes {stable_mosaic.version = 11 : i64} {
  func.func @_fire_kernel(%arg0: i32, %arg1: memref<4x512xbf16, #tpu.memory_space<vmem>>, %arg2: memref<9x512xf32, #tpu.memory_space<vmem>>, %arg3: memref<16x4xbf16, #tpu.memory_space<vmem>>, %arg4: memref<16x1xf32, #tpu.memory_space<vmem>>, %arg5: memref<32x144xbf16, #tpu.memory_space<vmem>>, %arg6: memref<32x1xf32, #tpu.memory_space<vmem>>, %arg7: memref<32x512xf32, #tpu.memory_space<vmem>>, %arg8: memref<144x512xbf16, #tpu.memory_space<vmem>>) attributes {dimension_semantics = [#tpu.dimension_semantics<parallel>], iteration_bounds = array<i64: 1>, scalar_prefetch = 0 : i64, scratch_operands = 1 : i64, tpu.core_type = #tpu.core_type<tc>, window_params = [{transform_indices = @transform_0, window_bounds = array<i64: 4, 512>}, {pipeline_mode = #tpu.pipeline_mode<synchronous>, transform_indices = @transform_1, window_bounds = array<i64: 9, 512>}, {pipeline_mode = #tpu.pipeline_mode<synchronous>, transform_indices = @transform_2, window_bounds = array<i64: 16, 4>}, {pipeline_mode = #tpu.pipeline_mode<synchronous>, transform_indices = @transform_3, window_bounds = array<i64: 16, 1>}, {pipeline_mode = #tpu.pipeline_mode<synchronous>, transform_indices = @transform_4, window_bounds = array<i64: 32, 144>}, {pipeline_mode = #tpu.pipeline_mode<synchronous>, transform_indices = @transform_5, window_bounds = array<i64: 32, 1>}, {transform_indices = @transform_6, window_bounds = array<i64: 32, 512>}]} {
    %c0 = arith.constant 0 : index
    %c0_0 = arith.constant 0 : index
    %0 = vector.load %arg3[%c0, %c0_0] : memref<16x4xbf16, #tpu.memory_space<vmem>>, vector<16x4xbf16>
    %c0_1 = arith.constant 0 : index
    %c0_2 = arith.constant 0 : index
    %1 = vector.load %arg1[%c0_1, %c0_2] : memref<4x512xbf16, #tpu.memory_space<vmem>>, vector<4x512xbf16>
    %cst = arith.constant dense<0.000000e+00> : vector<16x512xf32>
    %2 = tpu.matmul %0, %1, %cst {dimension_numbers = #tpu.dot_dimension_numbers<[1], [0], [0], [1], [0, 0, 1, 1], [], []>} : vector<16x4xbf16>, vector<4x512xbf16>, vector<16x512xf32> -> vector<16x512xf32>
    %c0_3 = arith.constant 0 : index
    %c0_4 = arith.constant 0 : index
    %3 = vector.load %arg4[%c0_3, %c0_4] : memref<16x1xf32, #tpu.memory_space<vmem>>, vector<16x1xf32>
    %4 = vector.broadcast %3 : vector<16x1xf32> to vector<16x512xf32>
    %5 = arith.addf %2, %4 : vector<16x512xf32>
    %cst_5 = arith.constant 0.000000e+00 : f32
    %6 = vector.broadcast %cst_5 : f32 to vector<16x512xf32>
    %7 = arith.maximumf %5, %6 : vector<16x512xf32>
    %c17_i32 = arith.constant 17 : i32
    %8 = tpu.dynamic_rotate %7 by %c17_i32 dim 1 : vector<16x512xf32>, i32 -> vector<16x512xf32>
    %c0_6 = arith.constant 0 : index
    %c0_7 = arith.constant 0 : index
    %9 = vector.load %arg2[%c0_6, %c0_7] : memref<9x512xf32, #tpu.memory_space<vmem>>, vector<1x512xf32>
    %10 = vector.broadcast %9 : vector<1x512xf32> to vector<16x512xf32>
    %11 = arith.mulf %8, %10 : vector<16x512xf32>
    %12 = arith.truncf %11 : vector<16x512xf32> to vector<16x512xbf16>
    %c0_8 = arith.constant 0 : index
    %c0_9 = arith.constant 0 : index
    %13 = vector.load %arg8[%c0_8, %c0_9] : memref<144x512xbf16, #tpu.memory_space<vmem>>, vector<16x512xbf16>
    tpu.vector_store %arg8[%c0_8, %c0_9], %12 {strides = array<i32>} : memref<144x512xbf16, #tpu.memory_space<vmem>>, vector<16x512xbf16>,
    %c16_i32 = arith.constant 16 : i32
    %14 = tpu.dynamic_rotate %7 by %c16_i32 dim 1 : vector<16x512xf32>, i32 -> vector<16x512xf32>
    %c1 = arith.constant 1 : index
    %c0_10 = arith.constant 0 : index
    %15 = vector.load %arg2[%c1, %c0_10] : memref<9x512xf32, #tpu.memory_space<vmem>>, vector<1x512xf32>
    %16 = vector.broadcast %15 : vector<1x512xf32> to vector<16x512xf32>
    %17 = arith.mulf %14, %16 : vector<16x512xf32>
    %18 = arith.truncf %17 : vector<16x512xf32> to vector<16x512xbf16>
    %c16 = arith.constant 16 : index
    %c0_11 = arith.constant 0 : index
    %19 = vector.load %arg8[%c16, %c0_11] : memref<144x512xbf16, #tpu.memory_space<vmem>>, vector<16x512xbf16>
    tpu.vector_store %arg8[%c16, %c0_11], %18 {strides = array<i32>} : memref<144x512xbf16, #tpu.memory_space<vmem>>, vector<16x512xbf16>,
    %c15_i32 = arith.constant 15 : i32
    %20 = tpu.dynamic_rotate %7 by %c15_i32 dim 1 : vector<16x512xf32>, i32 -> vector<16x512xf32>
    %c2 = arith.constant 2 : index
    %c0_12 = arith.constant 0 : index
    %21 = vector.load %arg2[%c2, %c0_12] : memref<9x512xf32, #tpu.memory_space<vmem>>, vector<1x512xf32>
    %22 = vector.broadcast %21 : vector<1x512xf32> to vector<16x512xf32>
    %23 = arith.mulf %20, %22 : vector<16x512xf32>
    %24 = arith.truncf %23 : vector<16x512xf32> to vector<16x512xbf16>
    %c32 = arith.constant 32 : index
    %c0_13 = arith.constant 0 : index
    %25 = vector.load %arg8[%c32, %c0_13] : memref<144x512xbf16, #tpu.memory_space<vmem>>, vector<16x512xbf16>
    tpu.vector_store %arg8[%c32, %c0_13], %24 {strides = array<i32>} : memref<144x512xbf16, #tpu.memory_space<vmem>>, vector<16x512xbf16>,
    %c1_i32 = arith.constant 1 : i32
    %26 = tpu.dynamic_rotate %7 by %c1_i32 dim 1 : vector<16x512xf32>, i32 -> vector<16x512xf32>
    %c3 = arith.constant 3 : index
    %c0_14 = arith.constant 0 : index
    %27 = vector.load %arg2[%c3, %c0_14] : memref<9x512xf32, #tpu.memory_space<vmem>>, vector<1x512xf32>
    %28 = vector.broadcast %27 : vector<1x512xf32> to vector<16x512xf32>
    %29 = arith.mulf %26, %28 : vector<16x512xf32>
    %30 = arith.truncf %29 : vector<16x512xf32> to vector<16x512xbf16>
    %c48 = arith.constant 48 : index
    %c0_15 = arith.constant 0 : index
    %31 = vector.load %arg8[%c48, %c0_15] : memref<144x512xbf16, #tpu.memory_space<vmem>>, vector<16x512xbf16>
    tpu.vector_store %arg8[%c48, %c0_15], %30 {strides = array<i32>} : memref<144x512xbf16, #tpu.memory_space<vmem>>, vector<16x512xbf16>,
    %32 = arith.truncf %7 : vector<16x512xf32> to vector<16x512xbf16>
    %c64 = arith.constant 64 : index
    %c0_16 = arith.constant 0 : index
    %33 = vector.load %arg8[%c64, %c0_16] : memref<144x512xbf16, #tpu.memory_space<vmem>>, vector<16x512xbf16>
    tpu.vector_store %arg8[%c64, %c0_16], %32 {strides = array<i32>} : memref<144x512xbf16, #tpu.memory_space<vmem>>, vector<16x512xbf16>,
    %c511_i32 = arith.constant 511 : i32
    %34 = tpu.dynamic_rotate %7 by %c511_i32 dim 1 : vector<16x512xf32>, i32 -> vector<16x512xf32>
    %c5 = arith.constant 5 : index
    %c0_17 = arith.constant 0 : index
    %35 = vector.load %arg2[%c5, %c0_17] : memref<9x512xf32, #tpu.memory_space<vmem>>, vector<1x512xf32>
    %36 = vector.broadcast %35 : vector<1x512xf32> to vector<16x512xf32>
    %37 = arith.mulf %34, %36 : vector<16x512xf32>
    %38 = arith.truncf %37 : vector<16x512xf32> to vector<16x512xbf16>
    %c80 = arith.constant 80 : index
    %c0_18 = arith.constant 0 : index
    %39 = vector.load %arg8[%c80, %c0_18] : memref<144x512xbf16, #tpu.memory_space<vmem>>, vector<16x512xbf16>
    tpu.vector_store %arg8[%c80, %c0_18], %38 {strides = array<i32>} : memref<144x512xbf16, #tpu.memory_space<vmem>>, vector<16x512xbf16>,
    %c497_i32 = arith.constant 497 : i32
    %40 = tpu.dynamic_rotate %7 by %c497_i32 dim 1 : vector<16x512xf32>, i32 -> vector<16x512xf32>
    %c6 = arith.constant 6 : index
    %c0_19 = arith.constant 0 : index
    %41 = vector.load %arg2[%c6, %c0_19] : memref<9x512xf32, #tpu.memory_space<vmem>>, vector<1x512xf32>
    %42 = vector.broadcast %41 : vector<1x512xf32> to vector<16x512xf32>
    %43 = arith.mulf %40, %42 : vector<16x512xf32>
    %44 = arith.truncf %43 : vector<16x512xf32> to vector<16x512xbf16>
    %c96 = arith.constant 96 : index
    %c0_20 = arith.constant 0 : index
    %45 = vector.load %arg8[%c96, %c0_20] : memref<144x512xbf16, #tpu.memory_space<vmem>>, vector<16x512xbf16>
    tpu.vector_store %arg8[%c96, %c0_20], %44 {strides = array<i32>} : memref<144x512xbf16, #tpu.memory_space<vmem>>, vector<16x512xbf16>,
    %c496_i32 = arith.constant 496 : i32
    %46 = tpu.dynamic_rotate %7 by %c496_i32 dim 1 : vector<16x512xf32>, i32 -> vector<16x512xf32>
    %c7 = arith.constant 7 : index
    %c0_21 = arith.constant 0 : index
    %47 = vector.load %arg2[%c7, %c0_21] : memref<9x512xf32, #tpu.memory_space<vmem>>, vector<1x512xf32>
    %48 = vector.broadcast %47 : vector<1x512xf32> to vector<16x512xf32>
    %49 = arith.mulf %46, %48 : vector<16x512xf32>
    %50 = arith.truncf %49 : vector<16x512xf32> to vector<16x512xbf16>
    %c112 = arith.constant 112 : index
    %c0_22 = arith.constant 0 : index
    %51 = vector.load %arg8[%c112, %c0_22] : memref<144x512xbf16, #tpu.memory_space<vmem>>, vector<16x512xbf16>
    tpu.vector_store %arg8[%c112, %c0_22], %50 {strides = array<i32>} : memref<144x512xbf16, #tpu.memory_space<vmem>>, vector<16x512xbf16>,
    %c495_i32 = arith.constant 495 : i32
    %52 = tpu.dynamic_rotate %7 by %c495_i32 dim 1 : vector<16x512xf32>, i32 -> vector<16x512xf32>
    %c8 = arith.constant 8 : index
    %c0_23 = arith.constant 0 : index
    %53 = vector.load %arg2[%c8, %c0_23] : memref<9x512xf32, #tpu.memory_space<vmem>>, vector<1x512xf32>
    %54 = vector.broadcast %53 : vector<1x512xf32> to vector<16x512xf32>
    %55 = arith.mulf %52, %54 : vector<16x512xf32>
    %56 = arith.truncf %55 : vector<16x512xf32> to vector<16x512xbf16>
    %c128 = arith.constant 128 : index
    %c0_24 = arith.constant 0 : index
    %57 = vector.load %arg8[%c128, %c0_24] : memref<144x512xbf16, #tpu.memory_space<vmem>>, vector<16x512xbf16>
    tpu.vector_store %arg8[%c128, %c0_24], %56 {strides = array<i32>} : memref<144x512xbf16, #tpu.memory_space<vmem>>, vector<16x512xbf16>,
    %c0_25 = arith.constant 0 : index
    %c0_26 = arith.constant 0 : index
    %58 = vector.load %arg8[%c0_25, %c0_26] : memref<144x512xbf16, #tpu.memory_space<vmem>>, vector<144x512xbf16>
    %c0_27 = arith.constant 0 : index
    %c0_28 = arith.constant 0 : index
    %59 = vector.load %arg5[%c0_27, %c0_28] : memref<32x144xbf16, #tpu.memory_space<vmem>>, vector<32x144xbf16>
    %cst_29 = arith.constant dense<0.000000e+00> : vector<32x512xf32>
    %60 = tpu.matmul %59, %58, %cst_29 {dimension_numbers = #tpu.dot_dimension_numbers<[1], [0], [0], [1], [0, 0, 1, 1], [], []>} : vector<32x144xbf16>, vector<144x512xbf16>, vector<32x512xf32> -> vector<32x512xf32>
    %c0_30 = arith.constant 0 : index
    %c0_31 = arith.constant 0 : index
    %61 = vector.load %arg6[%c0_30, %c0_31] : memref<32x1xf32, #tpu.memory_space<vmem>>, vector<32x1xf32>
    %62 = vector.broadcast %61 : vector<32x1xf32> to vector<32x512xf32>
    %63 = arith.addf %60, %62 : vector<32x512xf32>
    %cst_32 = arith.constant 0.000000e+00 : f32
    %64 = vector.broadcast %cst_32 : f32 to vector<32x512xf32>
    %65 = arith.maximumf %63, %64 : vector<32x512xf32>
    %c0_33 = arith.constant 0 : index
    %c0_34 = arith.constant 0 : index
    %66 = vector.load %arg7[%c0_33, %c0_34] : memref<32x512xf32, #tpu.memory_space<vmem>>, vector<32x512xf32>
    tpu.vector_store %arg7[%c0_33, %c0_34], %65 {strides = array<i32>} : memref<32x512xf32, #tpu.memory_space<vmem>>, vector<32x512xf32>,
    return
  }
  func.func @transform_0(%arg0: i32) -> (i32, i32) {
    %c0_i32 = arith.constant 0 : i32
    %c0_i32_0 = arith.constant 0 : i32
    return %c0_i32, %arg0 : i32, i32
  }
  func.func @transform_1(%arg0: i32) -> (i32, i32) {
    %c0_i32 = arith.constant 0 : i32
    %c0_i32_0 = arith.constant 0 : i32
    %c0_i32_1 = arith.constant 0 : i32
    return %c0_i32, %c0_i32_0 : i32, i32
  }
  func.func @transform_2(%arg0: i32) -> (i32, i32) {
    %c0_i32 = arith.constant 0 : i32
    %c0_i32_0 = arith.constant 0 : i32
    %c0_i32_1 = arith.constant 0 : i32
    return %c0_i32, %c0_i32_0 : i32, i32
  }
  func.func @transform_3(%arg0: i32) -> (i32, i32) {
    %c0_i32 = arith.constant 0 : i32
    %c0_i32_0 = arith.constant 0 : i32
    %c0_i32_1 = arith.constant 0 : i32
    return %c0_i32, %c0_i32_0 : i32, i32
  }
  func.func @transform_4(%arg0: i32) -> (i32, i32) {
    %c0_i32 = arith.constant 0 : i32
    %c0_i32_0 = arith.constant 0 : i32
    %c0_i32_1 = arith.constant 0 : i32
    return %c0_i32, %c0_i32_0 : i32, i32
  }
  func.func @transform_5(%arg0: i32) -> (i32, i32) {
    %c0_i32 = arith.constant 0 : i32
    %c0_i32_0 = arith.constant 0 : i32
    %c0_i32_1 = arith.constant 0 : i32
    return %c0_i32, %c0_i32_0 : i32, i32
  }
  func.func @transform_6(%arg0: i32) -> (i32, i32) {
    %c0_i32 = arith.constant 0 : i32
    %c0_i32_0 = arith.constant 0 : i32
    return %c0_i32, %arg0 : i32, i32
  }
}

</mosaic_0001>

<llo_original>
// kernel: fire_forward_nchw.1
$region0: #{fire_forward_nchw.1}
  #allocation0 [shape = 'u32[]', space=smem, size = 0x4, offset = 0x4, fixed_abs, tag = 'smem constant byte address 0x4 - core index']
  #allocation1 [shape = 'u32[144,128]{1,0:T(1,128)}', space=vmem, size = 0x12000, scoped, tag = 'internal scratch']
  #allocation2 [shape = 'bf16[144,512]{1,0:T(16,128)(2,1)}', space=vmem, size = 0x24000, scoped, tag = 'scratch operand']
  %s0 = inlined_call_operand.vmem [shape: bf16[4,512], index: 0, kind: input, shape index: {}]
  %s1 = inlined_call_operand.vmem [shape: f32[9,512], index: 1, kind: input, shape index: {}]
  %s2 = inlined_call_operand.vmem [shape: bf16[16,4], index: 2, kind: input, shape index: {}]
  %s3 = inlined_call_operand.vmem [shape: f32[16,1], index: 3, kind: input, shape index: {}]
  %s4 = inlined_call_operand.vmem [shape: bf16[32,144], index: 4, kind: input, shape index: {}]
  %s5 = inlined_call_operand.vmem [shape: f32[32,1], index: 5, kind: input, shape index: {}]
  %s6 = inlined_call_operand.vmem [shape: f32[32,512], index: 6, kind: output, shape index: {}]
  %s7 = sld [smem:[#allocation0]]
  $region34: #{fire_forward_nchw.1} parent=0
    _
  %s9 = ssub.s32 1, %s7
  %s10 = scalar_select 0, %s9, %s7
  // Predicated region
  $region2: #{fire_forward_nchw.1} parent=0 // pred_check
    _
  $region3: #{fire_forward_nchw.1} parent=0 // pred_check_branch
    %12 = sbr.rel (0) target = $region5
  $region4: #{fire_forward_nchw.1} parent=0 // pred_region
    _
  $region5: #{fire_forward_nchw.1} parent=0 // pred_fallthru
    _
  // Predicated region
  $region6: #{fire_forward_nchw.1} parent=0 // pred_check
    _
  $region7: #{fire_forward_nchw.1} parent=0 // pred_check_branch
    %14 = sbr.rel (0) target = $region9
  $region8: #{fire_forward_nchw.1} parent=0 // pred_region
    _
  $region9: #{fire_forward_nchw.1} parent=0 // pred_fallthru
    _
  // Predicated region
  $region10: #{fire_forward_nchw.1} parent=0 // pred_check
    _
  $region11: #{fire_forward_nchw.1} parent=0 // pred_check_branch
    %16 = sbr.rel (0) target = $region13
  $region12: #{fire_forward_nchw.1} parent=0 // pred_region
    _
  $region13: #{fire_forward_nchw.1} parent=0 // pred_fallthru
    _
  // Predicated region
  $region14: #{fire_forward_nchw.1} parent=0 // pred_check
    _
  $region15: #{fire_forward_nchw.1} parent=0 // pred_check_branch
    %18 = sbr.rel (0) target = $region17
  $region16: #{fire_forward_nchw.1} parent=0 // pred_region
    _
  $region17: #{fire_forward_nchw.1} parent=0 // pred_fallthru
    _
  // Predicated region
  $region18: #{fire_forward_nchw.1} parent=0 // pred_check
    _
  $region19: #{fire_forward_nchw.1} parent=0 // pred_check_branch
    %20 = sbr.rel (0) target = $region21
  $region20: #{fire_forward_nchw.1} parent=0 // pred_region
    _
  $region21: #{fire_forward_nchw.1} parent=0 // pred_fallthru
    _
  // Predicated region
  $region22: #{fire_forward_nchw.1} parent=0 // pred_check
    _
  $region23: #{fire_forward_nchw.1} parent=0 // pred_check_branch
    %22 = sbr.rel (0) target = $region25
  $region24: #{fire_forward_nchw.1} parent=0 // pred_region
    _
  $region25: #{fire_forward_nchw.1} parent=0 // pred_fallthru
    _
  %v24 = vld [vmem:[%s2] sm:$0xf]
  %v25 = vld [vmem:[%s2 + $0x4] sm:$0xf]
  %v26 = vld [vmem:[%s0] sm:$0xff]
  %v27 = vld [vmem:[%s3] sm:$0xff]
  %v28 = vld [vmem:[%s3 + $0x8] sm:$0xff]
  %30 = vset.pattern.permute.xlu0 0
  %31 = vperm.xlu0 %30, %v27
  %v32 = vpop.permute.xlu0 %31
  %35 = vset.pattern.permute.xlu0 0
  %36 = vperm.xlu0 %35, %v28
  %v37 = vpop.permute.xlu0 %36
  %v41 = vunpack.c.l.b16 %v24
  %v42 = vunpack.c.l.b16 %v25
  %v43 = vpack.c.b16 %v42, %v41
  %v45 = vcombine.high %v26, %v26
  %v47 = vunpack.c.l.s4 1983009808
  %v48 = vunpack.c.0.s8 %v47
  %v49 = vlaneseq
  %v50 = vshrl.u32 %v49, 7
  %v51 = vsub.s32 %v48, %v50
  %v52 = vrot.slane %v26, %v51
  %v54 = vunpack.c.l.s4 1983009808
  %v55 = vunpack.c.0.s8 %v54
  %v56 = vlaneseq
  %v57 = vshrl.u32 %v56, 7
  %v58 = vsub.s32 %v55, %v57
  %v59 = vrot.slane %v45, %v58
  %v60 = vcombine.high %v52, %v52
  %v61 = vcombine.high %v59, %v59
  %vm62 = vcmask 31744
  %v64 = vsel %vm62, %v43, 0
  %vm66 = vcmask 1041408
  %v68 = vsel %vm66, %v52, 0
  %v71 = vsel %vm66, %v60, 0
  %v74 = vsel %vm66, %v59, 0
  %v77 = vsel %vm66, %v61, 0
  %79 = vmatprep.subr.bf16.mxu0 %v71
  %80 = vmatpush1.bf16.msra.mxu0 %v68
  %81 = vmatprep.subr.bf16.mxu0 0
  %82 = vmatpush1.bf16.msra.mxu0 0
  %83 = vmatprep.subr.bf16.mxu0 0
  %84 = vmatpush1.bf16.msra.mxu0 0
  %85 = vmatprep.subr.bf16.mxu0 0
  %86 = vmatpush1.bf16.msra.mxu0 0
  %87 = vmatprep.subr.bf16.mxu0 0
  %88 = vmatpush1.bf16.msra.mxu0 0
  %89 = vmatprep.subr.bf16.mxu0 0
  %90 = vmatpush1.bf16.msra.mxu0 0
  %91 = vmatprep.subr.bf16.mxu0 0
  %92 = vmatpush1.bf16.msra.mxu0 0
  %93 = vmatprep.subr.bf16.mxu0 0
  %94 = vmatpush1.bf16.msra.mxu0 0
  %95 = vmatprep.subr.bf16.mxu0 0
  %96 = vmatpush1.bf16.msra.mxu0 0
  %97 = vmatprep.subr.bf16.mxu0 0
  %98 = vmatpush1.bf16.msra.mxu0 0
  %99 = vmatprep.subr.bf16.mxu0 0
  %100 = vmatpush1.bf16.msra.mxu0 0
  %101 = vmatprep.subr.bf16.mxu0 0
  %102 = vmatpush1.bf16.msra.mxu0 0
  %103 = vmatprep.subr.bf16.mxu0 0
  %104 = vmatpush1.bf16.msra.mxu0 0
  %105 = vmatprep.subr.bf16.mxu0 0
  %106 = vmatpush1.bf16.msra.mxu0 0
  %107 = vmatprep.subr.bf16.mxu0 0
  %108 = vmatpush1.bf16.msra.mxu0 0
  %109 = vmatprep.subr.bf16.mxu0 0
  %110 = vmatpush1.bf16.msra.mxu0 0
  %111 = vmatprep.mubr.bf16.mxu0 0
  %112 = vmatmul.mubr.bf16.gmra.mrb[0].mxu0 %v64
  %v113 = vpop.f32.mrb[0].mxu0
  %v114 = vadd.f32 %v32, %v113
  %v115 = vpop.f32.mrb[0].mxu0
  %v116 = vadd.f32 %v32, %v115
  %v117 = vpop.f32.mrb[0].mxu0
  %v118 = vadd.f32 %v37, %v117
  %v119 = vpop.f32.mrb[0].mxu0
  %v120 = vadd.f32 %v37, %v119
  %121 = vdwg.mxu0
  %122 = vmatprep.subr.bf16.mxu0 %v77
  %123 = vmatpush1.bf16.msra.mxu0 %v74
  %124 = vmatprep.subr.bf16.mxu0 0
  %125 = vmatpush1.bf16.msra.mxu0 0
  %126 = vmatprep.subr.bf16.mxu0 0
  %127 = vmatpush1.bf16.msra.mxu0 0
  %128 = vmatprep.subr.bf16.mxu0 0
  %129 = vmatpush1.bf16.msra.mxu0 0
  %130 = vmatprep.subr.bf16.mxu0 0
  %131 = vmatpush1.bf16.msra.mxu0 0
  %132 = vmatprep.subr.bf16.mxu0 0
  %133 = vmatpush1.bf16.msra.mxu0 0
  %134 = vmatprep.subr.bf16.mxu0 0
  %135 = vmatpush1.bf16.msra.mxu0 0
  %136 = vmatprep.subr.bf16.mxu0 0
  %137 = vmatpush1.bf16.msra.mxu0 0
  %138 = vmatprep.subr.bf16.mxu0 0
  %139 = vmatpush1.bf16.msra.mxu0 0
  %140 = vmatprep.subr.bf16.mxu0 0
  %141 = vmatpush1.bf16.msra.mxu0 0
  %142 = vmatprep.subr.bf16.mxu0 0
  %143 = vmatpush1.bf16.msra.mxu0 0
  %144 = vmatprep.subr.bf16.mxu0 0
  %145 = vmatpush1.bf16.msra.mxu0 0
  %146 = vmatprep.subr.bf16.mxu0 0
  %147 = vmatpush1.bf16.msra.mxu0 0
  %148 = vmatprep.subr.bf16.mxu0 0
  %149 = vmatpush1.bf16.msra.mxu0 0
  %150 = vmatprep.subr.bf16.mxu0 0
  %151 = vmatpush1.bf16.msra.mxu0 0
  %152 = vmatprep.subr.bf16.mxu0 0
  %153 = vmatpush1.bf16.msra.mxu0 0
  %154 = vmatprep.mubr.bf16.mxu0 0
  %155 = vmatmul.mubr.bf16.gmra.mrb[0].mxu0 %v64
  %v156 = vpop.f32.mrb[0].mxu0
  %v157 = vadd.f32 %v32, %v156
  %v158 = vpop.f32.mrb[0].mxu0
  %v159 = vadd.f32 %v32, %v158
  %v160 = vpop.f32.mrb[0].mxu0
  %v161 = vadd.f32 %v37, %v160
  %v162 = vpop.f32.mrb[0].mxu0
  %v163 = vadd.f32 %v37, %v162
  %164 = vdwg.mxu0
  %v165 = vmax.f32 %v114, 0.0
  %v166 = vmax.f32 %v116, 0.0
  %v167 = vmax.f32 %v157, 0.0
  %v168 = vmax.f32 %v159, 0.0
  %v169 = vmax.f32 %v118, 0.0
  %v170 = vmax.f32 %v120, 0.0
  %v171 = vmax.f32 %v161, 0.0
  %v172 = vmax.f32 %v163, 0.0
  %173 = vrot.lane.b32.xlu0 %v165, 17
  %v174 = vpop.permute.xlu0 %173
  %175 = vrot.lane.b32.xlu0 %v169, 17
  %v176 = vpop.permute.xlu0 %175
  %177 = vrot.lane.b32.xlu0 %v166, 17
  %v178 = vpop.permute.xlu0 %177
  %179 = vrot.lane.b32.xlu0 %v170, 17
  %v180 = vpop.permute.xlu0 %179
  %181 = vrot.lane.b32.xlu0 %v167, 17
  %v182 = vpop.permute.xlu0 %181
  %183 = vrot.lane.b32.xlu0 %v171, 17
  %v184 = vpop.permute.xlu0 %183
  %185 = vrot.lane.b32.xlu0 %v168, 17
  %v186 = vpop.permute.xlu0 %185
  %187 = vrot.lane.b32.xlu0 %v172, 17
  %v188 = vpop.permute.xlu0 %187
  %v189 = vlaneseq
  %v190 = vand.u32 %v189, 127
  %vm191 = vcmp.lt.s32.totalorder %v190, 17
  %v192 = vsel %vm191, %v182, %v186
  %v193 = vsel %vm191, %v184, %v188
  %v194 = vsel %vm191, %v178, %v182
  %v195 = vsel %vm191, %v180, %v184
  %v196 = vsel %vm191, %v174, %v178
  %v197 = vsel %vm191, %v176, %v180
  %v198 = vsel %vm191, %v186, %v174
  %v199 = vsel %vm191, %v188, %v176
  %v200 = vld [vmem:[%s1] ss:$8 sm:$0xf]
  %v202 = vlaneseq
  %v203 = vshrl.u32 %v202, 7
  %v204 = vsub.s32 0, %v203
  %v205 = vrot.slane %v200, %v204
  %v206 = vlaneseq
  %v207 = vshrl.u32 %v206, 7
  %v208 = vsub.s32 1, %v207
  %v209 = vrot.slane %v200, %v208
  %v210 = vlaneseq
  %v211 = vshrl.u32 %v210, 7
  %v212 = vsub.s32 2, %v211
  %v213 = vrot.slane %v200, %v212
  %v214 = vlaneseq
  %v215 = vshrl.u32 %v214, 7
  %v216 = vsub.s32 3, %v215
  %v217 = vrot.slane %v200, %v216
  %v222 = vmul.f32 %v198, %v205
  %v223 = vmul.f32 %v196, %v209
  %v224 = vmul.f32 %v194, %v213
  %v225 = vmul.f32 %v192, %v217
  %v226 = vmul.f32 %v199, %v205
  %v227 = vmul.f32 %v197, %v209
  %v228 = vmul.f32 %v195, %v213
  %v229 = vmul.f32 %v193, %v217
  %v230 = vpack.c.bf16 %v226, %v222
  %v231 = vpack.c.bf16 %v227, %v223
  %v232 = vpack.c.bf16 %v228, %v224
  %v233 = vpack.c.bf16 %v229, %v225
  %234 = vst [vmem:[#allocation2] sm:$0xff] %v230
  %235 = vst [vmem:[#allocation2 + $0x8] sm:$0xff] %v231
  %236 = vst [vmem:[#allocation2 + $0x10] sm:$0xff] %v232
  %237 = vst [vmem:[#allocation2 + $0x18] sm:$0xff] %v233
  %238 = vrot.lane.b32.xlu0 %v165, 16
  %v239 = vpop.permute.xlu0 %238
  %240 = vrot.lane.b32.xlu0 %v169, 16
  %v241 = vpop.permute.xlu0 %240
  %242 = vrot.lane.b32.xlu0 %v166, 16
  %v243 = vpop.permute.xlu0 %242
  %244 = vrot.lane.b32.xlu0 %v170, 16
  %v245 = vpop.permute.xlu0 %244
  %246 = vrot.lane.b32.xlu0 %v167, 16
  %v247 = vpop.permute.xlu0 %246
  %248 = vrot.lane.b32.xlu0 %v171, 16
  %v249 = vpop.permute.xlu0 %248
  %250 = vrot.lane.b32.xlu0 %v168, 16
  %v251 = vpop.permute.xlu0 %250
  %252 = vrot.lane.b32.xlu0 %v172, 16
  %v253 = vpop.permute.xlu0 %252
  %vm254 = vcmp.lt.s32.totalorder %v190, 16
  %v255 = vsel %vm254, %v247, %v251
  %v256 = vsel %vm254, %v249, %v253
  %v257 = vsel %vm254, %v243, %v247
  %v258 = vsel %vm254, %v245, %v249
  %v259 = vsel %vm254, %v239, %v243
  %v260 = vsel %vm254, %v241, %v245
  %v261 = vsel %vm254, %v251, %v239
  %v262 = vsel %vm254, %v253, %v241
  %s263 = scalar_lea.vmem %s1, 1
  %v264 = vld [vmem:[%s263] ss:$8 sm:$0xf]
  %v266 = vlaneseq
  %v267 = vshrl.u32 %v266, 7
  %v268 = vsub.s32 0, %v267
  %v269 = vrot.slane %v264, %v268
  %v270 = vlaneseq
  %v271 = vshrl.u32 %v270, 7
  %v272 = vsub.s32 1, %v271
  %v273 = vrot.slane %v264, %v272
  %v274 = vlaneseq
  %v275 = vshrl.u32 %v274, 7
  %v276 = vsub.s32 2, %v275
  %v277 = vrot.slane %v264, %v276
  %v278 = vlaneseq
  %v279 = vshrl.u32 %v278, 7
  %v280 = vsub.s32 3, %v279
  %v281 = vrot.slane %v264, %v280
  %v286 = vmul.f32 %v261, %v269
  %v287 = vmul.f32 %v259, %v273
  %v288 = vmul.f32 %v257, %v277
  %v289 = vmul.f32 %v255, %v281
  %v290 = vmul.f32 %v262, %v269
  %v291 = vmul.f32 %v260, %v273
  %v292 = vmul.f32 %v258, %v277
  %v293 = vmul.f32 %v256, %v281
  %v294 = vpack.c.bf16 %v290, %v286
  %v295 = vpack.c.bf16 %v291, %v287
  %v296 = vpack.c.bf16 %v292, %v288
  %v297 = vpack.c.bf16 %v293, %v289
  %298 = vst [vmem:[#allocation2 + $0x20] sm:$0xff] %v294
  %299 = vst [vmem:[#allocation2 + $0x28] sm:$0xff] %v295
  %300 = vst [vmem:[#allocation2 + $0x30] sm:$0xff] %v296
  %301 = vst [vmem:[#allocation2 + $0x38] sm:$0xff] %v297
  %302 = vrot.lane.b32.xlu0 %v165, 15
  %v303 = vpop.permute.xlu0 %302
  %304 = vrot.lane.b32.xlu0 %v169, 15
  %v305 = vpop.permute.xlu0 %304
  %306 = vrot.lane.b32.xlu0 %v166, 15
  %v307 = vpop.permute.xlu0 %306
  %308 = vrot.lane.b32.xlu0 %v170, 15
  %v309 = vpop.permute.xlu0 %308
  %310 = vrot.lane.b32.xlu0 %v167, 15
  %v311 = vpop.permute.xlu0 %310
  %312 = vrot.lane.b32.xlu0 %v171, 15
  %v313 = vpop.permute.xlu0 %312
  %314 = vrot.lane.b32.xlu0 %v168, 15
  %v315 = vpop.permute.xlu0 %314
  %316 = vrot.lane.b32.xlu0 %v172, 15
  %v317 = vpop.permute.xlu0 %316
  %vm318 = vcmp.lt.s32.totalorder %v190, 15
  %v319 = vsel %vm318, %v311, %v315
  %v320 = vsel %vm318, %v313, %v317
  %v321 = vsel %vm318, %v307, %v311
  %v322 = vsel %vm318, %v309, %v313
  %v323 = vsel %vm318, %v303, %v307
  %v324 = vsel %vm318, %v305, %v309
  %v325 = vsel %vm318, %v315, %v303
  %v326 = vsel %vm318, %v317, %v305
  %s327 = scalar_lea.vmem %s1, 2
  %v328 = vld [vmem:[%s327] ss:$8 sm:$0xf]
  %v330 = vlaneseq
  %v331 = vshrl.u32 %v330, 7
  %v332 = vsub.s32 0, %v331
  %v333 = vrot.slane %v328, %v332
  %v334 = vlaneseq
  %v335 = vshrl.u32 %v334, 7
  %v336 = vsub.s32 1, %v335
  %v337 = vrot.slane %v328, %v336
  %v338 = vlaneseq
  %v339 = vshrl.u32 %v338, 7
  %v340 = vsub.s32 2, %v339
  %v341 = vrot.slane %v328, %v340
  %v342 = vlaneseq
  %v343 = vshrl.u32 %v342, 7
  %v344 = vsub.s32 3, %v343
  %v345 = vrot.slane %v328, %v344
  %v350 = vmul.f32 %v325, %v333
  %v351 = vmul.f32 %v323, %v337
  %v352 = vmul.f32 %v321, %v341
  %v353 = vmul.f32 %v319, %v345
  %v354 = vmul.f32 %v326, %v333
  %v355 = vmul.f32 %v324, %v337
  %v356 = vmul.f32 %v322, %v341
  %v357 = vmul.f32 %v320, %v345
  %v358 = vpack.c.bf16 %v354, %v350
  %v359 = vpack.c.bf16 %v355, %v351
  %v360 = vpack.c.bf16 %v356, %v352
  %v361 = vpack.c.bf16 %v357, %v353
  %362 = vst [vmem:[#allocation2 + $0x40] sm:$0xff] %v358
  %363 = vst [vmem:[#allocation2 + $0x48] sm:$0xff] %v359
  %364 = vst [vmem:[#allocation2 + $0x50] sm:$0xff] %v360
  %365 = vst [vmem:[#allocation2 + $0x58] sm:$0xff] %v361
  %366 = vrot.lane.b32.xlu0 %v165, 1
  %v367 = vpop.permute.xlu0 %366
  %368 = vrot.lane.b32.xlu0 %v169, 1
  %v369 = vpop.permute.xlu0 %368
  %370 = vrot.lane.b32.xlu0 %v166, 1
  %v371 = vpop.permute.xlu0 %370
  %372 = vrot.lane.b32.xlu0 %v170, 1
  %v373 = vpop.permute.xlu0 %372
  %374 = vrot.lane.b32.xlu0 %v167, 1
  %v375 = vpop.permute.xlu0 %374
  %376 = vrot.lane.b32.xlu0 %v171, 1
  %v377 = vpop.permute.xlu0 %376
  %378 = vrot.lane.b32.xlu0 %v168, 1
  %v379 = vpop.permute.xlu0 %378
  %380 = vrot.lane.b32.xlu0 %v172, 1
  %v381 = vpop.permute.xlu0 %380
  %vm382 = vcmp.lt.s32.totalorder %v190, 1
  %v383 = vsel %vm382, %v375, %v379
  %v384 = vsel %vm382, %v377, %v381
  %v385 = vsel %vm382, %v371, %v375
  %v386 = vsel %vm382, %v373, %v377
  %v387 = vsel %vm382, %v367, %v371
  %v388 = vsel %vm382, %v369, %v373
  %v389 = vsel %vm382, %v379, %v367
  %v390 = vsel %vm382, %v381, %v369
  %s391 = scalar_lea.vmem %s1, 3
  %v392 = vld [vmem:[%s391] ss:$8 sm:$0xf]
  %v394 = vlaneseq
  %v395 = vshrl.u32 %v394, 7
  %v396 = vsub.s32 0, %v395
  %v397 = vrot.slane %v392, %v396
  %v398 = vlaneseq
  %v399 = vshrl.u32 %v398, 7
  %v400 = vsub.s32 1, %v399
  %v401 = vrot.slane %v392, %v400
  %v402 = vlaneseq
  %v403 = vshrl.u32 %v402, 7
  %v404 = vsub.s32 2, %v403
  %v405 = vrot.slane %v392, %v404
  %v406 = vlaneseq
  %v407 = vshrl.u32 %v406, 7
  %v408 = vsub.s32 3, %v407
  %v409 = vrot.slane %v392, %v408
  %v414 = vmul.f32 %v389, %v397
  %v415 = vmul.f32 %v387, %v401
  %v416 = vmul.f32 %v385, %v405
  %v417 = vmul.f32 %v383, %v409
  %v418 = vmul.f32 %v390, %v397
  %v419 = vmul.f32 %v388, %v401
  %v420 = vmul.f32 %v386, %v405
  %v421 = vmul.f32 %v384, %v409
  %v422 = vpack.c.bf16 %v418, %v414
  %v423 = vpack.c.bf16 %v419, %v415
  %v424 = vpack.c.bf16 %v420, %v416
  %v425 = vpack.c.bf16 %v421, %v417
  %426 = vst [vmem:[#allocation2 + $0x60] sm:$0xff] %v422
  %427 = vst [vmem:[#allocation2 + $0x68] sm:$0xff] %v423
  %428 = vst [vmem:[#allocation2 + $0x70] sm:$0xff] %v424
  %429 = vst [vmem:[#allocation2 + $0x78] sm:$0xff] %v425
  %v430 = vpack.c.bf16 %v169, %v165
  %v431 = vpack.c.bf16 %v170, %v166
  %v432 = vpack.c.bf16 %v171, %v167
  %v433 = vpack.c.bf16 %v172, %v168
  %434 = vst [vmem:[#allocation2 + $0x80] sm:$0xff] %v430
  %435 = vst [vmem:[#allocation2 + $0x88] sm:$0xff] %v431
  %436 = vst [vmem:[#allocation2 + $0x90] sm:$0xff] %v432
  %437 = vst [vmem:[#allocation2 + $0x98] sm:$0xff] %v433
  %438 = vrot.lane.b32.xlu0 %v165, 127
  %v439 = vpop.permute.xlu0 %438
  %440 = vrot.lane.b32.xlu0 %v169, 127
  %v441 = vpop.permute.xlu0 %440
  %442 = vrot.lane.b32.xlu0 %v166, 127
  %v443 = vpop.permute.xlu0 %442
  %444 = vrot.lane.b32.xlu0 %v170, 127
  %v445 = vpop.permute.xlu0 %444
  %446 = vrot.lane.b32.xlu0 %v167, 127
  %v447 = vpop.permute.xlu0 %446
  %448 = vrot.lane.b32.xlu0 %v171, 127
  %v449 = vpop.permute.xlu0 %448
  %450 = vrot.lane.b32.xlu0 %v168, 127
  %v451 = vpop.permute.xlu0 %450
  %452 = vrot.lane.b32.xlu0 %v172, 127
  %v453 = vpop.permute.xlu0 %452
  %vm454 = vcmp.lt.s32.totalorder %v190, 127
  %v455 = vsel %vm454, %v447, %v451
  %v456 = vsel %vm454, %v449, %v453
  %v457 = vsel %vm454, %v443, %v447
  %v458 = vsel %vm454, %v445, %v449
  %v459 = vsel %vm454, %v439, %v443
  %v460 = vsel %vm454, %v441, %v445
  %v461 = vsel %vm454, %v451, %v439
  %v462 = vsel %vm454, %v453, %v441
  %s463 = scalar_lea.vmem %s1, 5
  %v464 = vld [vmem:[%s463] ss:$8 sm:$0xf]
  %v466 = vlaneseq
  %v467 = vshrl.u32 %v466, 7
  %v468 = vsub.s32 0, %v467
  %v469 = vrot.slane %v464, %v468
  %v470 = vlaneseq
  %v471 = vshrl.u32 %v470, 7
  %v472 = vsub.s32 1, %v471
  %v473 = vrot.slane %v464, %v472
  %v474 = vlaneseq
  %v475 = vshrl.u32 %v474, 7
  %v476 = vsub.s32 2, %v475
  %v477 = vrot.slane %v464, %v476
  %v478 = vlaneseq
  %v479 = vshrl.u32 %v478, 7
  %v480 = vsub.s32 3, %v479
  %v481 = vrot.slane %v464, %v480
  %v486 = vmul.f32 %v459, %v469
  %v487 = vmul.f32 %v457, %v473
  %v488 = vmul.f32 %v455, %v477
  %v489 = vmul.f32 %v461, %v481
  %v490 = vmul.f32 %v460, %v469
  %v491 = vmul.f32 %v458, %v473
  %v492 = vmul.f32 %v456, %v477
  %v493 = vmul.f32 %v462, %v481
  %v494 = vpack.c.bf16 %v490, %v486
  %v495 = vpack.c.bf16 %v491, %v487
  %v496 = vpack.c.bf16 %v492, %v488
  %v497 = vpack.c.bf16 %v493, %v489
  %498 = vst [vmem:[#allocation2 + $0xa0] sm:$0xff] %v494
  %499 = vst [vmem:[#allocation2 + $0xa8] sm:$0xff] %v495
  %500 = vst [vmem:[#allocation2 + $0xb0] sm:$0xff] %v496
  %501 = vst [vmem:[#allocation2 + $0xb8] sm:$0xff] %v497
  %502 = vrot.lane.b32.xlu0 %v165, 113
  %v503 = vpop.permute.xlu0 %502
  %504 = vrot.lane.b32.xlu0 %v169, 113
  %v505 = vpop.permute.xlu0 %504
  %506 = vrot.lane.b32.xlu0 %v166, 113
  %v507 = vpop.permute.xlu0 %506
  %508 = vrot.lane.b32.xlu0 %v170, 113
  %v509 = vpop.permute.xlu0 %508
  %510 = vrot.lane.b32.xlu0 %v167, 113
  %v511 = vpop.permute.xlu0 %510
  %512 = vrot.lane.b32.xlu0 %v171, 113
  %v513 = vpop.permute.xlu0 %512
  %514 = vrot.lane.b32.xlu0 %v168, 113
  %v515 = vpop.permute.xlu0 %514
  %516 = vrot.lane.b32.xlu0 %v172, 113
  %v517 = vpop.permute.xlu0 %516
  %vm518 = vcmp.lt.s32.totalorder %v190, 113
  %v519 = vsel %vm518, %v511, %v515
  %v520 = vsel %vm518, %v513, %v517
  %v521 = vsel %vm518, %v507, %v511
  %v522 = vsel %vm518, %v509, %v513
  %v523 = vsel %vm518, %v503, %v507
  %v524 = vsel %vm518, %v505, %v509
  %v525 = vsel %vm518, %v515, %v503
  %v526 = vsel %vm518, %v517, %v505
  %s527 = scalar_lea.vmem %s1, 6
  %v528 = vld [vmem:[%s527] ss:$8 sm:$0xf]
  %v530 = vlaneseq
  %v531 = vshrl.u32 %v530, 7
  %v532 = vsub.s32 0, %v531
  %v533 = vrot.slane %v528, %v532
  %v534 = vlaneseq
  %v535 = vshrl.u32 %v534, 7
  %v536 = vsub.s32 1, %v535
  %v537 = vrot.slane %v528, %v536
  %v538 = vlaneseq
  %v539 = vshrl.u32 %v538, 7
  %v540 = vsub.s32 2, %v539
  %v541 = vrot.slane %v528, %v540
  %v542 = vlaneseq
  %v543 = vshrl.u32 %v542, 7
  %v544 = vsub.s32 3, %v543
  %v545 = vrot.slane %v528, %v544
  %v550 = vmul.f32 %v523, %v533
  %v551 = vmul.f32 %v521, %v537
  %v552 = vmul.f32 %v519, %v541
  %v553 = vmul.f32 %v525, %v545
  %v554 = vmul.f32 %v524, %v533
  %v555 = vmul.f32 %v522, %v537
  %v556 = vmul.f32 %v520, %v541
  %v557 = vmul.f32 %v526, %v545
  %v558 = vpack.c.bf16 %v554, %v550
  %v559 = vpack.c.bf16 %v555, %v551
  %v560 = vpack.c.bf16 %v556, %v552
  %v561 = vpack.c.bf16 %v557, %v553
  %562 = vst [vmem:[#allocation2 + $0xc0] sm:$0xff] %v558
  %563 = vst [vmem:[#allocation2 + $0xc8] sm:$0xff] %v559
  %564 = vst [vmem:[#allocation2 + $0xd0] sm:$0xff] %v560
  %565 = vst [vmem:[#allocation2 + $0xd8] sm:$0xff] %v561
  %566 = vrot.lane.b32.xlu0 %v165, 112
  %v567 = vpop.permute.xlu0 %566
  %568 = vrot.lane.b32.xlu0 %v169, 112
  %v569 = vpop.permute.xlu0 %568
  %570 = vrot.lane.b32.xlu0 %v166, 112
  %v571 = vpop.permute.xlu0 %570
  %572 = vrot.lane.b32.xlu0 %v170, 112
  %v573 = vpop.permute.xlu0 %572
  %574 = vrot.lane.b32.xlu0 %v167, 112
  %v575 = vpop.permute.xlu0 %574
  %576 = vrot.lane.b32.xlu0 %v171, 112
  %v577 = vpop.permute.xlu0 %576
  %578 = vrot.lane.b32.xlu0 %v168, 112
  %v579 = vpop.permute.xlu0 %578
  %580 = vrot.lane.b32.xlu0 %v172, 112
  %v581 = vpop.permute.xlu0 %580
  %vm582 = vcmp.lt.s32.totalorder %v190, 112
  %v583 = vsel %vm582, %v575, %v579
  %v584 = vsel %vm582, %v577, %v581
  %v585 = vsel %vm582, %v571, %v575
  %v586 = vsel %vm582, %v573, %v577
  %v587 = vsel %vm582, %v567, %v571
  %v588 = vsel %vm582, %v569, %v573
  %v589 = vsel %vm582, %v579, %v567
  %v590 = vsel %vm582, %v581, %v569
  %s591 = scalar_lea.vmem %s1, 7
  %v592 = vld [vmem:[%s591] ss:$8 sm:$0xf]
  %v594 = vlaneseq
  %v595 = vshrl.u32 %v594, 7
  %v596 = vsub.s32 0, %v595
  %v597 = vrot.slane %v592, %v596
  %v598 = vlaneseq
  %v599 = vshrl.u32 %v598, 7
  %v600 = vsub.s32 1, %v599
  %v601 = vrot.slane %v592, %v600
  %v602 = vlaneseq
  %v603 = vshrl.u32 %v602, 7
  %v604 = vsub.s32 2, %v603
  %v605 = vrot.slane %v592, %v604
  %v606 = vlaneseq
  %v607 = vshrl.u32 %v606, 7
  %v608 = vsub.s32 3, %v607
  %v609 = vrot.slane %v592, %v608
  %v614 = vmul.f32 %v587, %v597
  %v615 = vmul.f32 %v585, %v601
  %v616 = vmul.f32 %v583, %v605
  %v617 = vmul.f32 %v589, %v609
  %v618 = vmul.f32 %v588, %v597
  %v619 = vmul.f32 %v586, %v601
  %v620 = vmul.f32 %v584, %v605
  %v621 = vmul.f32 %v590, %v609
  %v622 = vpack.c.bf16 %v618, %v614
  %v623 = vpack.c.bf16 %v619, %v615
  %v624 = vpack.c.bf16 %v620, %v616
  %v625 = vpack.c.bf16 %v621, %v617
  %626 = vst [vmem:[#allocation2 + $0xe0] sm:$0xff] %v622
  %627 = vst [vmem:[#allocation2 + $0xe8] sm:$0xff] %v623
  %628 = vst [vmem:[#allocation2 + $0xf0] sm:$0xff] %v624
  %629 = vst [vmem:[#allocation2 + $0xf8] sm:$0xff] %v625
  %630 = vrot.lane.b32.xlu0 %v165, 111
  %v631 = vpop.permute.xlu0 %630
  %632 = vrot.lane.b32.xlu0 %v169, 111
  %v633 = vpop.permute.xlu0 %632
  %634 = vrot.lane.b32.xlu0 %v166, 111
  %v635 = vpop.permute.xlu0 %634
  %636 = vrot.lane.b32.xlu0 %v170, 111
  %v637 = vpop.permute.xlu0 %636
  %638 = vrot.lane.b32.xlu0 %v167, 111
  %v639 = vpop.permute.xlu0 %638
  %640 = vrot.lane.b32.xlu0 %v171, 111
  %v641 = vpop.permute.xlu0 %640
  %642 = vrot.lane.b32.xlu0 %v168, 111
  %v643 = vpop.permute.xlu0 %642
  %644 = vrot.lane.b32.xlu0 %v172, 111
  %v645 = vpop.permute.xlu0 %644
  %vm646 = vcmp.lt.s32.totalorder %v190, 111
  %v647 = vsel %vm646, %v639, %v643
  %v648 = vsel %vm646, %v641, %v645
  %v649 = vsel %vm646, %v635, %v639
  %v650 = vsel %vm646, %v637, %v641
  %v651 = vsel %vm646, %v631, %v635
  %v652 = vsel %vm646, %v633, %v637
  %v653 = vsel %vm646, %v643, %v631
  %v654 = vsel %vm646, %v645, %v633
  %s655 = scalar_lea.vmem %s1, 32
  %v656 = vld [vmem:[%s655] ss:$8 sm:$0xf]
  %v658 = vlaneseq
  %v659 = vshrl.u32 %v658, 7
  %v660 = vsub.s32 0, %v659
  %v661 = vrot.slane %v656, %v660
  %v662 = vlaneseq
  %v663 = vshrl.u32 %v662, 7
  %v664 = vsub.s32 1, %v663
  %v665 = vrot.slane %v656, %v664
  %v666 = vlaneseq
  %v667 = vshrl.u32 %v666, 7
  %v668 = vsub.s32 2, %v667
  %v669 = vrot.slane %v656, %v668
  %v670 = vlaneseq
  %v671 = vshrl.u32 %v670, 7
  %v672 = vsub.s32 3, %v671
  %v673 = vrot.slane %v656, %v672
  %v678 = vmul.f32 %v651, %v661
  %v679 = vmul.f32 %v649, %v665
  %v680 = vmul.f32 %v647, %v669
  %v681 = vmul.f32 %v653, %v673
  %v682 = vmul.f32 %v652, %v661
  %v683 = vmul.f32 %v650, %v665
  %v684 = vmul.f32 %v648, %v669
  %v685 = vmul.f32 %v654, %v673
  %v686 = vpack.c.bf16 %v682, %v678
  %v687 = vpack.c.bf16 %v683, %v679
  %v688 = vpack.c.bf16 %v684, %v680
  %v689 = vpack.c.bf16 %v685, %v681
  %690 = vst [vmem:[#allocation2 + $0x100] sm:$0xff] %v686
  %691 = vst [vmem:[#allocation2 + $0x108] sm:$0xff] %v687
  %692 = vst [vmem:[#allocation2 + $0x110] sm:$0xff] %v688
  %693 = vst [vmem:[#allocation2 + $0x118] sm:$0xff] %v689
  %v694 = vld [vmem:[#allocation2] sm:$0xff]
  %v695 = vld [vmem:[#allocation2 + $0x8] sm:$0xff]
  %v696 = vld [vmem:[#allocation2 + $0x10] sm:$0xff]
  %v697 = vld [vmem:[#allocation2 + $0x18] sm:$0xff]
  %v698 = vld [vmem:[#allocation2 + $0x20] sm:$0xff]
  %v699 = vld [vmem:[#allocation2 + $0x28] sm:$0xff]
  %v700 = vld [vmem:[#allocation2 + $0x30] sm:$0xff]
  %v701 = vld [vmem:[#allocation2 + $0x38] sm:$0xff]
  %v702 = vld [vmem:[#allocation2 + $0x40] sm:$0xff]
  %v703 = vld [vmem:[#allocation2 + $0x48] sm:$0xff]
  %v704 = vld [vmem:[#allocation2 + $0x50] sm:$0xff]
  %v705 = vld [vmem:[#allocation2 + $0x58] sm:$0xff]
  %v706 = vld [vmem:[#allocation2 + $0x60] sm:$0xff]
  %v707 = vld [vmem:[#allocation2 + $0x68] sm:$0xff]
  %v708 = vld [vmem:[#allocation2 + $0x70] sm:$0xff]
  %v709 = vld [vmem:[#allocation2 + $0x78] sm:$0xff]
  %v710 = vld [vmem:[#allocation2 + $0x80] sm:$0xff]
  %v711 = vld [vmem:[#allocation2 + $0x88] sm:$0xff]
  %v712 = vld [vmem:[#allocation2 + $0x90] sm:$0xff]
  %v713 = vld [vmem:[#allocation2 + $0x98] sm:$0xff]
  %v714 = vld [vmem:[#allocation2 + $0xa0] sm:$0xff]
  %v715 = vld [vmem:[#allocation2 + $0xa8] sm:$0xff]
  %v716 = vld [vmem:[#allocation2 + $0xb0] sm:$0xff]
  %v717 = vld [vmem:[#allocation2 + $0xb8] sm:$0xff]
  %v718 = vld [vmem:[#allocation2 + $0xc0] sm:$0xff]
  %v719 = vld [vmem:[#allocation2 + $0xc8] sm:$0xff]
  %v720 = vld [vmem:[#allocation2 + $0xd0] sm:$0xff]
  %v721 = vld [vmem:[#allocation2 + $0xd8] sm:$0xff]
  %v722 = vld [vmem:[#allocation2 + $0xe0] sm:$0xff]
  %v723 = vld [vmem:[#allocation2 + $0xe8] sm:$0xff]
  %v724 = vld [vmem:[#allocation2 + $0xf0] sm:$0xff]
  %v725 = vld [vmem:[#allocation2 + $0xf8] sm:$0xff]
  %v726 = vld [vmem:[#allocation2 + $0x100] sm:$0xff]
  %v727 = vld [vmem:[#allocation2 + $0x108] sm:$0xff]
  %v728 = vld [vmem:[#allocation2 + $0x110] sm:$0xff]
  %v729 = vld [vmem:[#allocation2 + $0x118] sm:$0xff]
  %v730 = vld [vmem:[%s4] sm:$0xff]
  %v731 = vld [vmem:[%s4 + $0x8] sm:$0xff]
  %v732 = vld [vmem:[%s4 + $0x10] sm:$0xff]
  %v733 = vld [vmem:[%s4 + $0x18] sm:$0xff]
  %v734 = vld [vmem:[%s5] sm:$0xff]
  %v735 = vld [vmem:[%s5 + $0x8] sm:$0xff]
  %v736 = vld [vmem:[%s5 + $0x10] sm:$0xff]
  %v737 = vld [vmem:[%s5 + $0x18] sm:$0xff]
  %739 = vset.pattern.permute.xlu0 0
  %740 = vperm.xlu0 %739, %v734
  %v741 = vpop.permute.xlu0 %740
  %744 = vset.pattern.permute.xlu0 0
  %745 = vperm.xlu0 %744, %v735
  %v746 = vpop.permute.xlu0 %745
  %749 = vset.pattern.permute.xlu0 0
  %750 = vperm.xlu0 %749, %v736
  %v751 = vpop.permute.xlu0 %750
  %754 = vset.pattern.permute.xlu0 0
  %755 = vperm.xlu0 %754, %v737
  %v756 = vpop.permute.xlu0 %755
  %v762 = vunpack.c.l.b16 %v730
  %v763 = vunpack.c.h.b16 %v730
  %v764 = vunpack.c.l.b16 %v731
  %v765 = vunpack.c.h.b16 %v731
  %v766 = vunpack.c.l.b16 %v732
  %v767 = vunpack.c.h.b16 %v732
  %v768 = vunpack.c.l.b16 %v733
  %v769 = vunpack.c.h.b16 %v733
  %v770 = vpack.c.b16 %v764, %v762
  %v771 = vpack.c.b16 %v765, %v763
  %v772 = vpack.c.b16 %v768, %v766
  %v773 = vpack.c.b16 %v769, %v767
  %vm776 = vcmask 130048
  %v778 = vsel %vm776, %v771, 0
  %v781 = vsel %vm776, %v773, 0
  %783 = vmatprep.subr.bf16.mxu0 %v695
  %784 = vmatpush1.bf16.msra.mxu0 %v694
  %785 = vmatprep.subr.bf16.mxu0 %v699
  %786 = vmatpush1.bf16.msra.mxu0 %v698
  %787 = vmatprep.subr.bf16.mxu0 %v703
  %788 = vmatpush1.bf16.msra.mxu0 %v702
  %789 = vmatprep.subr.bf16.mxu0 %v707
  %790 = vmatpush1.bf16.msra.mxu0 %v706
  %791 = vmatprep.subr.bf16.mxu0 %v711
  %792 = vmatpush1.bf16.msra.mxu0 %v710
  %793 = vmatprep.subr.bf16.mxu0 %v715
  %794 = vmatpush1.bf16.msra.mxu0 %v714
  %795 = vmatprep.subr.bf16.mxu0 %v719
  %796 = vmatpush1.bf16.msra.mxu0 %v718
  %797 = vmatprep.subr.bf16.mxu0 %v723
  %798 = vmatpush1.bf16.msra.mxu0 %v722
  %799 = vmatprep.subr.bf16.mxu0 %v727
  %800 = vmatpush1.bf16.msra.mxu0 %v726
  %801 = vmatprep.subr.bf16.mxu0 0
  %802 = vmatpush1.bf16.msra.mxu0 0
  %803 = vmatprep.subr.bf16.mxu0 0
  %804 = vmatpush1.bf16.msra.mxu0 0
  %805 = vmatprep.subr.bf16.mxu0 0
  %806 = vmatpush1.bf16.msra.mxu0 0
  %807 = vmatprep.subr.bf16.mxu0 0
  %808 = vmatpush1.bf16.msra.mxu0 0
  %809 = vmatprep.subr.bf16.mxu0 0
  %810 = vmatpush1.bf16.msra.mxu0 0
  %811 = vmatprep.subr.bf16.mxu0 0
  %812 = vmatpush1.bf16.msra.mxu0 0
  %813 = vmatprep.subr.bf16.mxu0 0
  %814 = vmatpush1.bf16.msra.mxu0 0
  %815 = vmatprep.mubr.bf16.mxu0 %v778
  %816 = vmatmul.mubr.bf16.gmra.mrb[0].mxu0 %v770
  %v817 = vpop.f32.mrb[0].mxu0
  %v818 = vadd.f32 %v741, %v817
  %v819 = vpop.f32.mrb[0].mxu0
  %v820 = vadd.f32 %v741, %v819
  %v821 = vpop.f32.mrb[0].mxu0
  %v822 = vadd.f32 %v746, %v821
  %v823 = vpop.f32.mrb[0].mxu0
  %v824 = vadd.f32 %v746, %v823
  %825 = vmatprep.mubr.bf16.mxu0 %v781
  %826 = vmatmul.mubr.bf16.gmra.mrb[0].mxu0 %v772
  %v827 = vpop.f32.mrb[0].mxu0
  %v828 = vadd.f32 %v751, %v827
  %v829 = vpop.f32.mrb[0].mxu0
  %v830 = vadd.f32 %v751, %v829
  %v831 = vpop.f32.mrb[0].mxu0
  %v832 = vadd.f32 %v756, %v831
  %v833 = vpop.f32.mrb[0].mxu0
  %v834 = vadd.f32 %v756, %v833
  %835 = vdwg.mxu0
  %836 = vmatprep.subr.bf16.mxu0 %v697
  %837 = vmatpush1.bf16.msra.mxu0 %v696
  %838 = vmatprep.subr.bf16.mxu0 %v701
  %839 = vmatpush1.bf16.msra.mxu0 %v700
  %840 = vmatprep.subr.bf16.mxu0 %v705
  %841 = vmatpush1.bf16.msra.mxu0 %v704
  %842 = vmatprep.subr.bf16.mxu0 %v709
  %843 = vmatpush1.bf16.msra.mxu0 %v708
  %844 = vmatprep.subr.bf16.mxu0 %v713
  %845 = vmatpush1.bf16.msra.mxu0 %v712
  %846 = vmatprep.subr.bf16.mxu0 %v717
  %847 = vmatpush1.bf16.msra.mxu0 %v716
  %848 = vmatprep.subr.bf16.mxu0 %v721
  %849 = vmatpush1.bf16.msra.mxu0 %v720
  %850 = vmatprep.subr.bf16.mxu0 %v725
  %851 = vmatpush1.bf16.msra.mxu0 %v724
  %852 = vmatprep.subr.bf16.mxu0 %v729
  %853 = vmatpush1.bf16.msra.mxu0 %v728
  %854 = vmatprep.subr.bf16.mxu0 0
  %855 = vmatpush1.bf16.msra.mxu0 0
  %856 = vmatprep.subr.bf16.mxu0 0
  %857 = vmatpush1.bf16.msra.mxu0 0
  %858 = vmatprep.subr.bf16.mxu0 0
  %859 = vmatpush1.bf16.msra.mxu0 0
  %860 = vmatprep.subr.bf16.mxu0 0
  %861 = vmatpush1.bf16.msra.mxu0 0
  %862 = vmatprep.subr.bf16.mxu0 0
  %863 = vmatpush1.bf16.msra.mxu0 0
  %864 = vmatprep.subr.bf16.mxu0 0
  %865 = vmatpush1.bf16.msra.mxu0 0
  %866 = vmatprep.subr.bf16.mxu0 0
  %867 = vmatpush1.bf16.msra.mxu0 0
  %868 = vmatprep.mubr.bf16.mxu0 %v778
  %869 = vmatmul.mubr.bf16.gmra.mrb[0].mxu0 %v770
  %v870 = vpop.f32.mrb[0].mxu0
  %v871 = vadd.f32 %v741, %v870
  %v872 = vpop.f32.mrb[0].mxu0
  %v873 = vadd.f32 %v741, %v872
  %v874 = vpop.f32.mrb[0].mxu0
  %v875 = vadd.f32 %v746, %v874
  %v876 = vpop.f32.mrb[0].mxu0
  %v877 = vadd.f32 %v746, %v876
  %878 = vmatprep.mubr.bf16.mxu0 %v781
  %879 = vmatmul.mubr.bf16.gmra.mrb[0].mxu0 %v772
  %v880 = vpop.f32.mrb[0].mxu0
  %v881 = vadd.f32 %v751, %v880
  %v882 = vpop.f32.mrb[0].mxu0
  %v883 = vadd.f32 %v751, %v882
  %v884 = vpop.f32.mrb[0].mxu0
  %v885 = vadd.f32 %v756, %v884
  %v886 = vpop.f32.mrb[0].mxu0
  %v887 = vadd.f32 %v756, %v886
  %888 = vdwg.mxu0
  %v889 = vmax.f32 %v818, 0.0
  %v890 = vmax.f32 %v820, 0.0
  %v891 = vmax.f32 %v871, 0.0
  %v892 = vmax.f32 %v873, 0.0
  %v893 = vmax.f32 %v822, 0.0
  %v894 = vmax.f32 %v824, 0.0
  %v895 = vmax.f32 %v875, 0.0
  %v896 = vmax.f32 %v877, 0.0
  %v897 = vmax.f32 %v828, 0.0
  %v898 = vmax.f32 %v830, 0.0
  %v899 = vmax.f32 %v881, 0.0
  %v900 = vmax.f32 %v883, 0.0
  %v901 = vmax.f32 %v832, 0.0
  %v902 = vmax.f32 %v834, 0.0
  %v903 = vmax.f32 %v885, 0.0
  %v904 = vmax.f32 %v887, 0.0
  %905 = vst [vmem:[%s6] sm:$0xff] %v889
  %906 = vst [vmem:[%s6 + $0x8] sm:$0xff] %v890
  %907 = vst [vmem:[%s6 + $0x10] sm:$0xff] %v891
  %908 = vst [vmem:[%s6 + $0x18] sm:$0xff] %v892
  %909 = vst [vmem:[%s6 + $0x20] sm:$0xff] %v893
  %910 = vst [vmem:[%s6 + $0x28] sm:$0xff] %v894
  %911 = vst [vmem:[%s6 + $0x30] sm:$0xff] %v895
  %912 = vst [vmem:[%s6 + $0x38] sm:$0xff] %v896
  %913 = vst [vmem:[%s6 + $0x40] sm:$0xff] %v897
  %914 = vst [vmem:[%s6 + $0x48] sm:$0xff] %v898
  %915 = vst [vmem:[%s6 + $0x50] sm:$0xff] %v899
  %916 = vst [vmem:[%s6 + $0x58] sm:$0xff] %v900
  %917 = vst [vmem:[%s6 + $0x60] sm:$0xff] %v901
  %918 = vst [vmem:[%s6 + $0x68] sm:$0xff] %v902
  %919 = vst [vmem:[%s6 + $0x70] sm:$0xff] %v903
  %920 = vst [vmem:[%s6 + $0x78] sm:$0xff] %v904
  // Predicated region
  $region26: #{fire_forward_nchw.1} parent=0 // pred_check
    _
  $region27: #{fire_forward_nchw.1} parent=0 // pred_check_branch
    %922 = sbr.rel (0) target = $region29
  $region28: #{fire_forward_nchw.1} parent=0 // pred_region
    _
  $region29: #{fire_forward_nchw.1} parent=0 // pred_fallthru
    _
  // Predicated region
  $region30: #{fire_forward_nchw.1} parent=0 // pred_check
    _
  $region31: #{fire_forward_nchw.1} parent=0 // pred_check_branch
    %924 = sbr.rel (0) target = $region33
  $region32: #{fire_forward_nchw.1} parent=0 // pred_region
    _
  $region33: #{fire_forward_nchw.1} parent=0 // pred_fallthru
    _

</llo_original>
